<compile_context>
chip_gen: v6e
topology: v6e:2x2x1
jax: 0.10.0
libtpu: 0.0.40
codegen_flags: <defaults>
</compile_context>

<pallas_src>
import math
import functools

import numpy as np
import jax
import jax.numpy as jnp
from jax.experimental import pallas as pl
from jax.experimental.pallas import tpu as pltpu

INV_SQRT2 = 1.0 / math.sqrt(2.0)

LANE = 1024                   # lane-dense last dim (multiple of 128)
MAX_BLOCK_ROWS = 512          # 2 MiB f32 per block; safe on all generations
SMALL_INPUT_FALLBACK = 1 << 18  # below this, pure-JAX path (fusion + no launch)


# ----------------------------------------------------------------------------
# Kernel body: elementwise clipped GELU on one (block_rows, LANE) VMEM tile.
# ----------------------------------------------------------------------------
def _clipped_gelu_kernel(x_ref, o_ref, *, clip_min, clip_max):
    x = x_ref[...].astype(jnp.float32)           # upcast in-register, not in HBM
    g = x * 0.5 * (1.0 + jax.lax.erf(x * INV_SQRT2))
    o_ref[...] = jnp.clip(g, clip_min, clip_max).astype(o_ref.dtype)


# ----------------------------------------------------------------------------
# Exact same math in plain JAX (used for the small-input fallback, the
# misaligned tail epilogue, and as the test reference).
# ----------------------------------------------------------------------------
def _gelu_clip_math(x, clip_min, clip_max):
    xf = x.astype(jnp.float32)
    g = xf * 0.5 * (1.0 + jax.lax.erf(xf * INV_SQRT2))
    return jnp.clip(g, clip_min, clip_max).astype(x.dtype)


def clipped_gelu_reference(x, clip_min, clip_max):
    """Pure-JAX reference mirroring the PyTorch module exactly."""
    return _gelu_clip_math(x, clip_min, clip_max)


def _sublane_multiple(dtype):
    itemsize = jnp.dtype(dtype).itemsize
    return {4: 8, 2: 16, 1: 32}.get(itemsize, 8)


def _pick_block_rows(rows, sublane):
    """Choose block_rows (multiple of `sublane`, or == rows) with >=2 grid
    steps for medium inputs so both v7x TensorCores get work."""
    if rows > MAX_BLOCK_ROWS:
        return MAX_BLOCK_ROWS
    if rows >= 2 * sublane:
        half = -(-rows // 2)                       # ceil(rows / 2)
        return -(-half // sublane) * sublane       # round up to sublane multiple
    return rows                                    # full-dim block (always legal)


# ----------------------------------------------------------------------------
# Public wrapper.
# ----------------------------------------------------------------------------
def clipped_gelu(x, clip_min, clip_max, *,
                 min_pallas_elements=SMALL_INPUT_FALLBACK):
    """Apply clip(gelu(x), clip_min, clip_max) elementwise."""
    if clip_min > clip_max:
        raise ValueError(
            f"min should be < max (got min: {clip_min}, max: {clip_max})")

    clip_min = float(clip_min)
    clip_max = float(clip_max)
    orig_shape = x.shape
    total = int(np.prod(orig_shape)) if orig_shape else 1

    # Small-input fallback: let XLA fuse it; pallas_call would be pure overhead.
    if total == 0 or total < min_pallas_elements or total < LANE:
        return _gelu_clip_math(x, clip_min, clip_max)

    flat = x.reshape(-1)
    aligned_total = (total // LANE) * LANE
    tail = total - aligned_total

    # Aligned prefix -> lane-dense (rows, LANE) slab. No padding, no copies.
    main = flat if tail == 0 else flat[:aligned_total]
    rows = aligned_total // LANE
    x2d = main.reshape(rows, LANE)

    sublane = _sublane_multiple(x.dtype)
    block_rows = _pick_block_rows(rows, sublane)
    grid_rows = pl.cdiv(rows, block_rows)          # ragged last block is masked

    kernel = functools.partial(
        _clipped_gelu_kernel, clip_min=clip_min, clip_max=clip_max)

    y2d = pl.pallas_call(
        kernel,
        out_shape=jax.ShapeDtypeStruct((rows, LANE), x.dtype),
        grid=(grid_rows,),
        in_specs=[pl.BlockSpec((block_rows, LANE), lambda i: (i, 0))],
        out_specs=pl.BlockSpec((block_rows, LANE), lambda i: (i, 0)),
        compiler_params=pltpu.CompilerParams(
            dimension_semantics=("parallel",),
            vmem_limit_bytes=32 << 20),
    )(x2d)

    y = y2d.reshape(-1)
    if tail:
        # <1024-element tail: identical f32 erf path, fused by XLA.
        tail_out = _gelu_clip_math(flat[aligned_total:], clip_min, clip_max)
        y = jnp.concatenate([y, tail_out])
    return y.reshape(orig_shape)


# ----------------------------------------------------------------------------
# Demo / self-test.
# ----------------------------------------------------------------------------
if __name__ == "__main__":
    key = jax.random.PRNGKey(0)
    k1, k2, k3 = jax.random.split(key, 3)

    clip_min, clip_max = -0.1, 1.0   # exercises both clip bounds

    # 1) Module-sized input, lane-aligned (2*4*16*16 = 2048 = 2 full rows).
    #    min_pallas_elements=0 forces the Pallas path despite the small size.
    x1 = jax.random.normal(k1, (2, 4, 16, 16), dtype=jnp.float32) * 2.0
    y1 = jax.block_until_ready(
        clipped_gelu(x1, clip_min, clip_max, min_pallas_elements=0))
    np.testing.assert_allclose(
        np.asarray(y1), np.asarray(clipped_gelu_reference(x1, clip_min, clip_max)),
        rtol=1e-6, atol=1e-6)

    # 2) Misaligned total (3*5*17*9 = 2295): aligned prefix via Pallas,
    #    247-element tail via the jnp epilogue.
    x2 = jax.random.normal(k2, (3, 5, 17, 9), dtype=jnp.float32) * 2.0
    y2 = jax.block_until_ready(
        clipped_gelu(x2, clip_min, clip_max, min_pallas_elements=0))
    np.testing.assert_allclose(
        np.asarray(y2), np.asarray(clipped_gelu_reference(x2, clip_min, clip_max)),
        rtol=1e-6, atol=1e-6)

    # 3) bf16 input: HBM traffic stays in bf16, math in f32 inside the kernel.
    x3 = (jax.random.normal(k3, (2, 4, 16, 32), dtype=jnp.float32) * 2.0
          ).astype(jnp.bfloat16)
    y3 = jax.block_until_ready(
        clipped_gelu(x3, clip_min, clip_max, min_pallas_elements=0))
    np.testing.assert_allclose(
        np.asarray(y3, dtype=np.float32),
        np.asarray(clipped_gelu_reference(x3, clip_min, clip_max),
                   dtype=np.float32),
        rtol=2e-2, atol=2e-2)

    print("KERNEL_OK")
</pallas_src>

<mosaic_0001>
module attributes {stable_mosaic.version = 11 : i64} {
  func.func @_clipped_gelu_kernel(%arg0: i32, %arg1: memref<2x1024xf32, #tpu.memory_space<vmem>>, %arg2: memref<2x1024xf32, #tpu.memory_space<vmem>>) attributes {dimension_semantics = [#tpu.dimension_semantics<parallel>], iteration_bounds = array<i64: 1>, scalar_prefetch = 0 : i64, scratch_operands = 0 : i64, tpu.core_type = #tpu.core_type<tc>, window_params = [{transform_indices = @transform_0, window_bounds = array<i64: 2, 1024>}, {transform_indices = @transform_1, window_bounds = array<i64: 2, 1024>}]} {
    %c0 = arith.constant 0 : index
    %c0_0 = arith.constant 0 : index
    %0 = vector.load %arg1[%c0, %c0_0] : memref<2x1024xf32, #tpu.memory_space<vmem>>, vector<2x1024xf32>
    %cst = arith.constant 5.000000e-01 : f32
    %1 = vector.broadcast %cst : f32 to vector<2x1024xf32>
    %2 = arith.mulf %0, %1 : vector<2x1024xf32>
    %cst_1 = arith.constant 0.707106769 : f32
    %3 = vector.broadcast %cst_1 : f32 to vector<2x1024xf32>
    %4 = arith.mulf %0, %3 : vector<2x1024xf32>
    %5 = math.erf %4 : vector<2x1024xf32>
    %cst_2 = arith.constant 1.000000e+00 : f32
    %6 = vector.broadcast %cst_2 : f32 to vector<2x1024xf32>
    %7 = arith.addf %6, %5 : vector<2x1024xf32>
    %8 = arith.mulf %2, %7 : vector<2x1024xf32>
    %cst_3 = arith.constant -1.000000e-01 : f32
    %cst_4 = arith.constant 1.000000e+00 : f32
    %9 = vector.broadcast %cst_3 : f32 to vector<2x1024xf32>
    %10 = arith.maximumf %9, %8 : vector<2x1024xf32>
    %11 = vector.broadcast %cst_4 : f32 to vector<2x1024xf32>
    %12 = arith.minimumf %11, %10 : vector<2x1024xf32>
    %c0_5 = arith.constant 0 : index
    %c0_6 = arith.constant 0 : index
    %13 = vector.load %arg2[%c0_5, %c0_6] : memref<2x1024xf32, #tpu.memory_space<vmem>>, vector<2x1024xf32>
    tpu.vector_store %arg2[%c0_5, %c0_6], %12 {strides = array<i32>} : memref<2x1024xf32, #tpu.memory_space<vmem>>, vector<2x1024xf32>,
    return
  }
  func.func @transform_0(%arg0: i32) -> (i32, i32) {
    %c0_i32 = arith.constant 0 : i32
    %c0_i32_0 = arith.constant 0 : i32
    return %arg0, %c0_i32 : i32, i32
  }
  func.func @transform_1(%arg0: i32) -> (i32, i32) {
    %c0_i32 = arith.constant 0 : i32
    %c0_i32_0 = arith.constant 0 : i32
    return %arg0, %c0_i32 : i32, i32
  }
}

</mosaic_0001>

<llo_original>
// kernel: tpu_custom_call.1
$region0: #{tpu_custom_call.1}
  #allocation0 [shape = 'u32[]', space=smem, size = 0x4, offset = 0x4, fixed_abs, tag = 'smem constant byte address 0x4 - core index']
  #allocation1 [shape = 'u32[144,128]{1,0:T(1,128)}', space=vmem, size = 0x12000, scoped, tag = 'internal scratch']
  %s0 = inlined_call_operand.hbm [shape: f32[2,1024], index: 0, kind: input, shape index: {}]
  %s1 = inlined_call_operand.hbm [shape: f32[2,1024], index: 1, kind: output, shape index: {}]
  %s2 = sld [smem:[#allocation0]]
  $region18: #{tpu_custom_call.1} parent=0
    _
  %s4 = ssub.s32 1, %s2
  %s5 = scalar_select 0, %s4, %s2
  $region1: #{tpu_custom_call.1} parent=0
    #allocation2 [shape = 'u8[8192]{0}', space=vmem, size = 0x2000, scoped, tag = 'input window, operand 0, single buffered']
    #allocation3 [shape = 's32[1]{0}', space=sflag, size = 0x4, scoped, tag = 'scoped memory for tpu_custom_call.1']
    #allocation4 [shape = 's32[1]{0}', space=sflag, size = 0x4, scoped, tag = 'scoped memory for tpu_custom_call.1']
    #allocation5 [shape = 'u8[8192]{0}', space=vmem, size = 0x2000, scoped, tag = 'output window, operand 0, single buffered']
    %6 = vsyncpa [#allocation3], 0
    %7 = vsyncpa [#allocation4], 0
    // Predicated region
    $region2: #{tpu_custom_call.1} parent=1 // pred_check
      _
    $region3: #{tpu_custom_call.1} parent=1 // pred_check_branch
      %9 = sbr.rel (0) target = $region5
    $region4: #{tpu_custom_call.1} parent=1 // pred_region
      %s11 = ssub.s32 256, 256
      %12 = vsyncadd [#allocation3], %s11
      %s14 = sshll.u32 [#allocation2], 4
      %s15 = int_to_ptr.vmem [resolvable:$true] %s14
      %17 = dma.hbm_to_vmem [thread:$0]  %s0, 256, %s15, [#allocation3]
    $region5: #{tpu_custom_call.1} parent=1 // pred_fallthru
      _
    // Predicated region
    $region6: #{tpu_custom_call.1} parent=1 // pred_check
      _
    $region7: #{tpu_custom_call.1} parent=1 // pred_check_branch
      %19 = sbr.rel (0) target = $region9
    $region8: #{tpu_custom_call.1} parent=1 // pred_region
      %20 = dma.done [#allocation3], 256
    $region9: #{tpu_custom_call.1} parent=1 // pred_fallthru
      _
    %v21 = vld [vmem:[#allocation2] sm:$0xff]
    %v22 = vld [vmem:[#allocation2 + $0x8] sm:$0xff]
    %v23 = vmul.f32 %v21, 0.5
    %v24 = vmul.f32 %v22, 0.5
    %v25 = vmul.f32 %v21, 0.70710677
    %v26 = vmul.f32 %v22, 0.70710677
    %v27 = verf.f32.pop %v25
    %v28 = verf.f32.pop %v26
    %v29 = vadd.f32 %v27, 1.0
    %v30 = vadd.f32 %v28, 1.0
    %v31 = vmul.f32 %v23, %v29
    %v32 = vmul.f32 %v24, %v30
    %v33 = vmax.f32 %v31, -0.1
    %v34 = vmax.f32 %v32, -0.1
    %v35 = vmin.f32 %v33, 1.0
    %v36 = vmin.f32 %v34, 1.0
    %37 = vst [vmem:[#allocation5] sm:$0xff] %v35
    %38 = vst [vmem:[#allocation5 + $0x8] sm:$0xff] %v36
    // Predicated region
    $region10: #{tpu_custom_call.1} parent=1 // pred_check
      _
    $region11: #{tpu_custom_call.1} parent=1 // pred_check_branch
      %40 = sbr.rel (0) target = $region13
    $region12: #{tpu_custom_call.1} parent=1 // pred_region
      %s42 = ssub.s32 256, 256
      %43 = vsyncadd [#allocation4], %s42
      %s45 = sshll.u32 [#allocation5], 4
      %s46 = int_to_ptr.vmem [resolvable:$true] %s45
      %48 = dma.vmem_to_hbm [thread:$0]  %s46, 256, %s1, [#allocation4]
    $region13: #{tpu_custom_call.1} parent=1 // pred_fallthru
      _
    // Predicated region
    $region14: #{tpu_custom_call.1} parent=1 // pred_check
      _
    $region15: #{tpu_custom_call.1} parent=1 // pred_check_branch
      %50 = sbr.rel (0) target = $region17
    $region16: #{tpu_custom_call.1} parent=1 // pred_region
      %51 = dma.done [#allocation4], 256
    $region17: #{tpu_custom_call.1} parent=1 // pred_fallthru
      _
    %52 = vsyncpa [#allocation3], 1
    %53 = vsyncpa [#allocation4], 1

</llo_original>
